<compile_context>
chip_gen: v5e
topology: v5e:2x2
jax: 0.10.0
libtpu: 0.0.40
codegen_flags: <defaults>
</compile_context>

<pallas_src>
import functools

import jax
import jax.numpy as jnp
from jax.experimental import pallas as pl
from jax.experimental.pallas import tpu as pltpu


PARAM_DTYPE = jnp.bfloat16
LANE = 128                       # all channel dims zero-padded to this lane width
SUBLANE = 16                     # bf16 packs 2 rows/sublane -> row tiles multiple of 16
VMEM_LIMIT = 32 * 1024 * 1024    # scoped-VMEM budget safe on v5e / v6e / v7x
DEFAULT_TM = 256
LN_EPS = 1e-5


def _round_up(x, m):
    return ((x + m - 1) // m) * m


def _row_tiling(M, tm=DEFAULT_TM):
    """Row tile: multiple of 16 (bf16 sublanes), capped so the grid has >= 2 parallel
    steps when possible (both v7x TensorCores get work)."""
    TM = _round_up(max(1, -(-M // 2)), SUBLANE)
    TM = max(SUBLANE, min(tm, TM))
    return TM, _round_up(M, TM)


# ----------------------------------------------------------------------------
# Shared in-kernel helpers
# ----------------------------------------------------------------------------

def _ln_padded(h, g_ref, b_ref, d_real, eps):
    """LayerNorm over the REAL channel width d_real of a lane-padded f32 tile whose pad
    lanes are zero; gamma/beta pads are zero, so padded lanes stay zero after LN."""
    inv_d = 1.0 / float(d_real)
    mean = jnp.sum(h, axis=-1, keepdims=True) * inv_d
    ex2 = jnp.sum(h * h, axis=-1, keepdims=True) * inv_d
    var = ex2 - mean * mean
    y = (h - mean) * jax.lax.rsqrt(var + eps)
    return y * g_ref[...].astype(jnp.float32) + b_ref[...].astype(jnp.float32)


def _conv_taps(h, K):
    """Build the (L, K*C) tap tile for a 'same' conv from an (L, C) tile so each conv is
    a SINGLE matmul (contraction K*C) instead of K shifted-slice matmuls.
    TODO(synk): the shifted taps could alternatively be produced with pltpu.roll (XLU)."""
    L, C = h.shape
    pad = (K - 1) // 2
    if pad == 0:
        return h
    z = jnp.zeros((pad, C), h.dtype)
    hp = jnp.concatenate([z, h, z], axis=0)                  # (L + K - 1, C)
    return jnp.concatenate([hp[j:j + L, :] for j in range(K)], axis=-1)


# ----------------------------------------------------------------------------
# Row-tiled linear (prenet, fused mu/logvar projection)
# ----------------------------------------------------------------------------

def _matmul_bias_kernel(x_ref, w_ref, b_ref, o_ref, *, activation):
    acc = jnp.dot(x_ref[...], w_ref[...], preferred_element_type=jnp.float32)
    acc = acc + b_ref[...].astype(jnp.float32)
    if activation == "relu":
        acc = jnp.maximum(acc, 0.0)
    o_ref[...] = acc.astype(o_ref.dtype)


def linear2d(x, w, b, activation="none", tm=DEFAULT_TM):
    """y = x @ w + b.  x: (M, K), w: (K, N), b: (1, N); K, N are 128-multiples."""
    M, K = x.shape
    N = w.shape[1]
    TM, Mp = _row_tiling(M, tm)
    xp = jnp.pad(x, ((0, Mp - M), (0, 0))) if Mp != M else x
    kernel = functools.partial(_matmul_bias_kernel, activation=activation)
    cost = pl.CostEstimate(
        flops=2 * Mp * K * N, transcendentals=0,
        bytes_accessed=(Mp * K + K * N + N + Mp * N) * x.dtype.itemsize)
    out = pl.pallas_call(
        kernel,
        out_shape=jax.ShapeDtypeStruct((Mp, N), x.dtype),
        grid=(Mp // TM,),
        in_specs=[
            pl.BlockSpec((TM, K), lambda i: (i, 0)),
            pl.BlockSpec((K, N), lambda i: (0, 0)),
            pl.BlockSpec((1, N), lambda i: (0, 0)),
        ],
        out_specs=pl.BlockSpec((TM, N), lambda i: (i, 0)),
        compiler_params=pltpu.CompilerParams(
            dimension_semantics=("parallel",), vmem_limit_bytes=VMEM_LIMIT),
        cost_estimate=cost,
    )(xp, w, b)
    return out[:M] if Mp != M else out


# ----------------------------------------------------------------------------
# Fused FFT block (one pallas_call per batch element)
# ----------------------------------------------------------------------------

def _fft_block_kernel(x_ref, wqkv_ref, bqkv_ref, wo_ref, bo_ref,
                      g1_ref, b1_ref, c1w_ref, c1b_ref, c2w_ref, c2b_ref,
                      g2_ref, b2_ref, o_ref, attn_scr,
                      *, num_heads, d_real, K, eps):
    L, Dp = x_ref.shape
    dhp = Dp // num_heads
    x = x_ref[...]                                           # (L, Dp) bf16, pad lanes = 0

    # Fused QKV projection; 1/sqrt(d_head) already folded into the Q columns/bias.
    qkv = jnp.dot(x, wqkv_ref[...], preferred_element_type=jnp.float32)
    qkv = (qkv + bqkv_ref[...].astype(jnp.float32)).astype(x.dtype)   # (L, 3*Dp)

    # Multi-head self-attention. Heads live in aligned 64-lane sub-blocks
    # (head h's real dims at lanes [h*dhp, h*dhp + d_head_real), rest zero), bf16
    # operands go straight to the MXU, per-head outputs are written into an f32
    # VMEM scratch slice (no lane concatenation).
    qk_dims = (((1,), (1,)), ((), ()))                       # q @ k^T
    for h in range(num_heads):                               # static, small head loop
        qh = qkv[:, h * dhp:(h + 1) * dhp]
        kh = qkv[:, Dp + h * dhp:Dp + (h + 1) * dhp]
        vh = qkv[:, 2 * Dp + h * dhp:2 * Dp + (h + 1) * dhp]
        s = jax.lax.dot_general(qh, kh, qk_dims, preferred_element_type=jnp.float32)
        s = s - jnp.max(s, axis=-1, keepdims=True)
        p = jnp.exp(s)
        p = p * pl.reciprocal(jnp.sum(p, axis=-1, keepdims=True), approx=True)
        attn_scr[:, h * dhp:(h + 1) * dhp] = jnp.dot(
            p.astype(vh.dtype), vh, preferred_element_type=jnp.float32)

    # Output projection + residual + LayerNorm1 (fused, f32 accumulation).
    attn = attn_scr[...].astype(x.dtype)
    o = jnp.dot(attn, wo_ref[...], preferred_element_type=jnp.float32)
    o = o + bo_ref[...].astype(jnp.float32)
    h1 = _ln_padded(x.astype(jnp.float32) + o, g1_ref, b1_ref, d_real, eps)
    h1_b = h1.astype(x.dtype)

    # Conv FFN: each 'same' conv is ONE (L, K*Dp) @ (K*Dp, Dp) matmul over a tap tile.
    f = jnp.dot(_conv_taps(h1_b, K), c1w_ref[...], preferred_element_type=jnp.float32)
    f = jnp.maximum(f + c1b_ref[...].astype(jnp.float32), 0.0).astype(x.dtype)
    g = jnp.dot(_conv_taps(f, K), c2w_ref[...], preferred_element_type=jnp.float32)
    g = g + c2b_ref[...].astype(jnp.float32)

    # Residual + LayerNorm2; final store is a lane-dense (L, 128) tile.
    o_ref[...] = _ln_padded(h1 + g, g2_ref, b2_ref, d_real, eps).astype(o_ref.dtype)


def fft_block(x, p, cfg):
    B, L, Dp = x.shape
    H, d_real, K = cfg["num_heads"], cfg["hidden"], cfg["kernel_size"]
    dhp = Dp // H
    kernel = functools.partial(_fft_block_kernel, num_heads=H, d_real=d_real,
                               K=K, eps=LN_EPS)
    it = x.dtype.itemsize
    flops = B * (2 * L * Dp * 3 * Dp + 4 * H * L * L * dhp
                 + 2 * L * Dp * Dp + 4 * L * K * Dp * Dp)
    w_bytes = (Dp * 3 * Dp + Dp * Dp + 2 * K * Dp * Dp + 8 * Dp) * it
    cost = pl.CostEstimate(flops=flops, transcendentals=B * (H * L * L + 2 * L),
                           bytes_accessed=2 * B * L * Dp * it + w_bytes)
    wspec = lambda r, c: pl.BlockSpec((r, c), lambda b: (0, 0))
    return pl.pallas_call(
        kernel,
        out_shape=jax.ShapeDtypeStruct((B, L, Dp), x.dtype),
        grid=(B,),
        in_specs=[
            pl.BlockSpec((None, L, Dp), lambda b: (b, 0, 0)),   # x (full L per batch)
            wspec(Dp, 3 * Dp), wspec(1, 3 * Dp),                # fused QKV
            wspec(Dp, Dp), wspec(1, Dp),                        # output projection
            wspec(1, Dp), wspec(1, Dp),                         # LN1 gamma/beta
            wspec(K * Dp, Dp), wspec(1, Dp),                    # conv1
            wspec(K * Dp, Dp), wspec(1, Dp),                    # conv2
            wspec(1, Dp), wspec(1, Dp),                         # LN2 gamma/beta
        ],
        out_specs=pl.BlockSpec((None, L, Dp), lambda b: (b, 0, 0)),
        scratch_shapes=[pltpu.VMEM((L, Dp), jnp.float32)],      # per-head attn outputs
        compiler_params=pltpu.CompilerParams(
            dimension_semantics=("parallel",), vmem_limit_bytes=VMEM_LIMIT),
        cost_estimate=cost,
    )(x, p["w_qkv"], p["b_qkv"], p["wo"], p["bo"], p["ln1_g"], p["ln1_b"],
      p["conv1_w"], p["conv1_b"], p["conv2_w"], p["conv2_b"], p["ln2_g"], p["ln2_b"])


# ----------------------------------------------------------------------------
# Fused duration predictor (one pallas_call per batch element)
# ----------------------------------------------------------------------------

def _duration_predictor_kernel(x_ref, c1w_ref, c1b_ref, g1_ref, b1_ref,
                               c2w_ref, c2b_ref, g2_ref, b2_ref,
                               pw_ref, pb_ref, o_ref, *, K, h_real, eps):
    x = x_ref[...]
    h = jnp.dot(_conv_taps(x, K), c1w_ref[...], preferred_element_type=jnp.float32)
    h = jnp.maximum(h + c1b_ref[...].astype(jnp.float32), 0.0)
    h = _ln_padded(h, g1_ref, b1_ref, h_real, eps).astype(x.dtype)
    h2 = jnp.dot(_conv_taps(h, K), c2w_ref[...], preferred_element_type=jnp.float32)
    h2 = jnp.maximum(h2 + c2b_ref[...].astype(jnp.float32), 0.0)
    h2 = _ln_padded(h2, g2_ref, b2_ref, h_real, eps).astype(x.dtype)
    d = jnp.dot(h2, pw_ref[...], preferred_element_type=jnp.float32)
    o_ref[...] = (d + pb_ref[...].astype(jnp.float32)).astype(o_ref.dtype)


def duration_predictor(x, p, cfg):
    B, L, Dp = x.shape
    K = cfg["dp_kernel"]
    Hp = p["conv1_w"].shape[1]
    No = p["proj_w"].shape[1]
    kernel = functools.partial(_duration_predictor_kernel, K=K,
                               h_real=cfg["dp_hidden"], eps=LN_EPS)
    wspec = lambda r, c: pl.BlockSpec((r, c), lambda b: (0, 0))
    out = pl.pallas_call(
        kernel,
        out_shape=jax.ShapeDtypeStruct((B, L, No), x.dtype),
        grid=(B,),
        in_specs=[
            pl.BlockSpec((None, L, Dp), lambda b: (b, 0, 0)),
            wspec(K * Dp, Hp), wspec(1, Hp),
            wspec(1, Hp), wspec(1, Hp),
            wspec(K * Hp, Hp), wspec(1, Hp),
            wspec(1, Hp), wspec(1, Hp),
            wspec(Hp, No), wspec(1, No),
        ],
        out_specs=pl.BlockSpec((None, L, No), lambda b: (b, 0, 0)),
        compiler_params=pltpu.CompilerParams(
            dimension_semantics=("parallel",), vmem_limit_bytes=VMEM_LIMIT),
    )(x, p["conv1_w"], p["conv1_b"], p["ln1_g"], p["ln1_b"],
      p["conv2_w"], p["conv2_b"], p["ln2_g"], p["ln2_b"], p["proj_w"], p["proj_b"])
    return out[..., 0]            # only lane 0 carries the real log-duration


# ----------------------------------------------------------------------------
# Length regulator (data-dependent gather -> plain-JAX glue)
# ----------------------------------------------------------------------------

def length_regulate(x, durations, total_T):
    """Repeat each phoneme frame durations[b, l] times; zero-pad to total_T."""
    B, L, D = x.shape
    cum = jnp.cumsum(durations, axis=1)                             # (B, L)
    t = jnp.arange(total_T)
    idx = jnp.sum(cum[:, None, :] <= t[None, :, None], axis=-1)     # (B, T)
    mask = (t[None, :] < cum[:, -1:]).astype(x.dtype)               # (B, T)
    idx = jnp.clip(idx, 0, L - 1)
    gathered = jnp.take_along_axis(x, idx[..., None], axis=1)       # (B, T, D)
    return gathered * mask[..., None]


# ----------------------------------------------------------------------------
# Forward
# ----------------------------------------------------------------------------

def pronunciation_encoder_forward(params, cfg, phonemes, durations, total_T):
    B, L_eos = phonemes.shape
    Dp = cfg["Dp"]

    emb = params["symbol_emb"][phonemes]                             # (B, L_eos, Dp) gather glue
    x = linear2d(emb.reshape(B * L_eos, Dp), params["prenet_w"], params["prenet_b"])
    x = x.reshape(B, L_eos, Dp)

    for blk in params["fft_pre"]:
        x = fft_block(x, blk, cfg)

    log_dur_full = duration_predictor(x, params["dp"], cfg)          # (B, L_eos)
    log_dur_pred = log_dur_full[:, :-1]                              # (B, L)

    x_up = length_regulate(x[:, :-1, :], durations, total_T)         # (B, T, Dp)
    for blk in params["fft_post"]:
        x_up = fft_block(x_up, blk, cfg)

    # proj_mu / proj_logvar (1x1 convs) fused into one lane-padded matmul.
    stats = linear2d(x_up.reshape(B * total_T, Dp), params["proj_w"], params["proj_b"])
    stats = stats.reshape(B, total_T, -1)
    z = cfg["z"]
    mu, logvar = stats[..., :z], stats[..., z:2 * z]
    return mu, logvar, log_dur_pred


# ----------------------------------------------------------------------------
# Deterministic parameter construction (lane/head-padded, pre-fused layouts)
# ----------------------------------------------------------------------------

def init_params(key, *, n_symbols, embed_dim, hidden_dim, z_dim,
                n_pre, n_post, kernel_size, dp_hidden, dp_kernel, num_heads,
                dtype=PARAM_DTYPE):
    assert kernel_size % 2 == 1 and dp_kernel % 2 == 1, "'same' padding assumes odd K"
    assert hidden_dim % num_heads == 0
    Dp = _round_up(max(hidden_dim, embed_dim, 2 * z_dim), LANE)
    Hp = _round_up(dp_hidden, LANE)
    Zp = _round_up(2 * z_dim, LANE)
    assert Dp % num_heads == 0
    dh = hidden_dim // num_heads
    dhp = Dp // num_heads

    keys = iter(jax.random.split(key, 1024))
    nk = lambda: next(keys)
    normal = lambda shape: (0.02 * jax.random.normal(nk(), shape, jnp.float32)).astype(dtype)
    zeros = lambda shape: jnp.zeros(shape, dtype)
    ones = lambda shape: jnp.ones(shape, dtype)

    def pad2d(w, rows, cols):
        return jnp.zeros((rows, cols), w.dtype).at[:w.shape[0], :w.shape[1]].set(w)

    def pad_bias(b, n):
        return jnp.zeros((1, n), b.dtype).at[0, :b.shape[0]].set(b)

    def head_pad_cols(w):
        # (rows, H*dh) -> (rows, H*dhp); head h's real dims land at lanes [h*dhp, h*dhp+dh).
        r = w.shape[0]
        out = jnp.zeros((r, num_heads, dhp), w.dtype)
        out = out.at[:, :, :dh].set(w.reshape(r, num_heads, dh))
        return out.reshape(r, num_heads * dhp)

    def head_pad_rows(w):
        c = w.shape[1]
        out = jnp.zeros((num_heads, dhp, c), w.dtype)
        out = out.at[:, :dh, :].set(w.reshape(num_heads, dh, c))
        return out.reshape(num_heads * dhp, c)

    def pad_conv(w, cin_p, cout_p):
        # tap-major (K, Cin, Cout)  [== torch_w.permute(2, 1, 0)]  ->  (K*cin_p, cout_p)
        Kk, cin, cout = w.shape
        out = jnp.zeros((Kk, cin_p, cout_p), w.dtype).at[:, :cin, :cout].set(w)
        return out.reshape(Kk * cin_p, cout_p)

    att_scale = 1.0 / float(dh) ** 0.5

    def fft_block_params():
        # 1/sqrt(d_head) folded into the Q projection (weight AND bias, so that a
        # pretrained checkpoint with nonzero Q bias stays correct).
        wq = (normal((hidden_dim, hidden_dim)).astype(jnp.float32) * att_scale).astype(dtype)
        bq = (zeros((hidden_dim,)).astype(jnp.float32) * att_scale).astype(dtype)
        wk, bk = normal((hidden_dim, hidden_dim)), zeros((hidden_dim,))
        wv, bv = normal((hidden_dim, hidden_dim)), zeros((hidden_dim,))
        wo, bo = normal((hidden_dim, hidden_dim)), zeros((hidden_dim,))
        c1 = normal((kernel_size, hidden_dim, hidden_dim))
        c2 = normal((kernel_size, hidden_dim, hidden_dim))
        return {
            "w_qkv": jnp.concatenate(
                [pad2d(head_pad_cols(w), Dp, Dp) for w in (wq, wk, wv)], axis=1),
            "b_qkv": jnp.concatenate(
                [head_pad_cols(b.reshape(1, -1)) for b in (bq, bk, bv)], axis=1),
            "wo": pad2d(head_pad_rows(wo), Dp, Dp),
            "bo": pad_bias(bo, Dp),
            "ln1_g": pad_bias(ones((hidden_dim,)), Dp),
            "ln1_b": pad_bias(zeros((hidden_dim,)), Dp),
            "conv1_w": pad_conv(c1, Dp, Dp), "conv1_b": pad_bias(zeros((hidden_dim,)), Dp),
            "conv2_w": pad_conv(c2, Dp, Dp), "conv2_b": pad_bias(zeros((hidden_dim,)), Dp),
            "ln2_g": pad_bias(ones((hidden_dim,)), Dp),
            "ln2_b": pad_bias(zeros((hidden_dim,)), Dp),
        }

    params = {
        "symbol_emb": pad2d(normal((n_symbols, embed_dim)), n_symbols, Dp),
        "prenet_w": pad2d(normal((embed_dim, hidden_dim)), Dp, Dp),
        "prenet_b": pad_bias(zeros((hidden_dim,)), Dp),
        "fft_pre": [fft_block_params() for _ in range(n_pre)],
        "fft_post": [fft_block_params() for _ in range(n_post)],
        "dp": {
            "conv1_w": pad_conv(normal((dp_kernel, hidden_dim, dp_hidden)), Dp, Hp),
            "conv1_b": pad_bias(zeros((dp_hidden,)), Hp),
            "ln1_g": pad_bias(ones((dp_hidden,)), Hp),
            "ln1_b": pad_bias(zeros((dp_hidden,)), Hp),
            "conv2_w": pad_conv(normal((dp_kernel, dp_hidden, dp_hidden)), Hp, Hp),
            "conv2_b": pad_bias(zeros((dp_hidden,)), Hp),
            "ln2_g": pad_bias(ones((dp_hidden,)), Hp),
            "ln2_b": pad_bias(zeros((dp_hidden,)), Hp),
            "proj_w": pad2d(normal((dp_hidden, 1)), Hp, LANE),   # 1x1 conv == linear
            "proj_b": pad_bias(zeros((1,)), LANE),
        },
        # proj_mu / proj_logvar (1x1 convs) fused: output cols [0, z) = mu, [z, 2z) = logvar
        "proj_w": pad2d(normal((hidden_dim, 2 * z_dim)), Dp, Zp),
        "proj_b": pad_bias(zeros((2 * z_dim,)), Zp),
    }
    cfg = dict(hidden=hidden_dim, embed=embed_dim, z=z_dim, num_heads=num_heads,
               kernel_size=kernel_size, dp_hidden=dp_hidden, dp_kernel=dp_kernel,
               Dp=Dp, Hp=Hp)
    return params, cfg


# ----------------------------------------------------------------------------
# Main
# ----------------------------------------------------------------------------

if __name__ == "__main__":
    # Small config (constructor args of PronunciationEncoder).
    n_symbols, embed_dim, hidden_dim, z_dim = 40, 32, 32, 16
    num_heads, kernel_size = 2, 3
    n_pre, n_post = 2, 2                 # reduced block counts for a small demo
    dp_hidden, dp_kernel = 64, 3

    B, L = 2, 8                          # L phonemes (excl. EOS); L_eos = L + 1
    L_eos = L + 1

    key = jax.random.PRNGKey(0)
    k_param, k_ph = jax.random.split(key, 2)

    params, cfg = init_params(
        k_param, n_symbols=n_symbols, embed_dim=embed_dim, hidden_dim=hidden_dim,
        z_dim=z_dim, n_pre=n_pre, n_post=n_post, kernel_size=kernel_size,
        dp_hidden=dp_hidden, dp_kernel=dp_kernel, num_heads=num_heads)

    phonemes = jax.random.randint(k_ph, (B, L_eos), 0, n_symbols, dtype=jnp.int32)

    # Static durations -> static regulated length known at trace time
    # (no device->host sync, no per-shape recompilation); T == batch max, as in the
    # PyTorch reference length regulator.
    durations_list = [[2, 2, 2, 2, 2, 2, 2, 2],
                      [1, 3, 1, 3, 1, 3, 1, 3]]
    durations = jnp.array(durations_list, dtype=jnp.int32)
    total_T = max(sum(row) for row in durations_list)        # == 16

    mu, logvar, log_dur_pred = pronunciation_encoder_forward(
        params, cfg, phonemes, durations, total_T)

    jax.block_until_ready((mu, logvar, log_dur_pred))
    assert mu.shape == (B, total_T, z_dim)
    assert logvar.shape == (B, total_T, z_dim)
    assert log_dur_pred.shape == (B, L)
    print("KERNEL_OK")
</pallas_src>

<mosaic_0001>
module attributes {stable_mosaic.version = 11 : i64} {
  func.func @_matmul_bias_kernel(%arg0: i32, %arg1: memref<16x128xbf16, #tpu.memory_space<vmem>>, %arg2: memref<128x128xbf16, #tpu.memory_space<vmem>>, %arg3: memref<1x128xbf16, #tpu.memory_space<vmem>>, %arg4: memref<16x128xbf16, #tpu.memory_space<vmem>>) attributes {dimension_semantics = [#tpu.dimension_semantics<parallel>], iteration_bounds = array<i64: 2>, scalar_prefetch = 0 : i64, scratch_operands = 0 : i64, tpu.core_type = #tpu.core_type<tc>, window_params = [{transform_indices = @transform_0, window_bounds = array<i64: 16, 128>}, {pipeline_mode = #tpu.pipeline_mode<synchronous>, transform_indices = @transform_1, window_bounds = array<i64: 128, 128>}, {pipeline_mode = #tpu.pipeline_mode<synchronous>, transform_indices = @transform_2, window_bounds = array<i64: 1, 128>}, {transform_indices = @transform_3, window_bounds = array<i64: 16, 128>}]} {
    %c0 = arith.constant 0 : index
    %c0_0 = arith.constant 0 : index
    %0 = vector.load %arg1[%c0, %c0_0] : memref<16x128xbf16, #tpu.memory_space<vmem>>, vector<16x128xbf16>
    %c0_1 = arith.constant 0 : index
    %c0_2 = arith.constant 0 : index
    %1 = vector.load %arg2[%c0_1, %c0_2] : memref<128x128xbf16, #tpu.memory_space<vmem>>, vector<128x128xbf16>
    %cst = arith.constant dense<0.000000e+00> : vector<16x128xf32>
    %2 = tpu.matmul %0, %1, %cst {dimension_numbers = #tpu.dot_dimension_numbers<[1], [0], [0], [1], [0, 0, 1, 1], [], []>} : vector<16x128xbf16>, vector<128x128xbf16>, vector<16x128xf32> -> vector<16x128xf32>
    %c0_3 = arith.constant 0 : index
    %c0_4 = arith.constant 0 : index
    %3 = vector.load %arg3[%c0_3, %c0_4] : memref<1x128xbf16, #tpu.memory_space<vmem>>, vector<1x128xbf16>
    %4 = arith.extf %3 : vector<1x128xbf16> to vector<1x128xf32>
    %5 = vector.broadcast %4 : vector<1x128xf32> to vector<16x128xf32>
    %6 = arith.addf %2, %5 : vector<16x128xf32>
    %7 = arith.truncf %6 : vector<16x128xf32> to vector<16x128xbf16>
    %c0_5 = arith.constant 0 : index
    %c0_6 = arith.constant 0 : index
    %8 = vector.load %arg4[%c0_5, %c0_6] : memref<16x128xbf16, #tpu.memory_space<vmem>>, vector<16x128xbf16>
    tpu.vector_store %arg4[%c0_5, %c0_6], %7 {strides = array<i32>} : memref<16x128xbf16, #tpu.memory_space<vmem>>, vector<16x128xbf16>,
    return
  }
  func.func @transform_0(%arg0: i32) -> (i32, i32) {
    %c0_i32 = arith.constant 0 : i32
    %c0_i32_0 = arith.constant 0 : i32
    return %arg0, %c0_i32 : i32, i32
  }
  func.func @transform_1(%arg0: i32) -> (i32, i32) {
    %c0_i32 = arith.constant 0 : i32
    %c0_i32_0 = arith.constant 0 : i32
    %c0_i32_1 = arith.constant 0 : i32
    return %c0_i32, %c0_i32_0 : i32, i32
  }
  func.func @transform_2(%arg0: i32) -> (i32, i32) {
    %c0_i32 = arith.constant 0 : i32
    %c0_i32_0 = arith.constant 0 : i32
    %c0_i32_1 = arith.constant 0 : i32
    return %c0_i32, %c0_i32_0 : i32, i32
  }
  func.func @transform_3(%arg0: i32) -> (i32, i32) {
    %c0_i32 = arith.constant 0 : i32
    %c0_i32_0 = arith.constant 0 : i32
    return %arg0, %c0_i32 : i32, i32
  }
}

</mosaic_0001>

<llo_original>
// kernel: tpu_custom_call.1
$region0: #{tpu_custom_call.1}
  #allocation0 [shape = 'u32[]', space=smem, size = 0x4, offset = 0x4, fixed_abs, tag = 'smem constant byte address 0x4 - core index']
  #allocation1 [shape = 'u32[72,128]{1,0:T(1,128)}', space=vmem, size = 0x9000, scoped, tag = 'internal scratch']
  %s0 = inlined_call_operand.hbm [shape: bf16[32,128], index: 0, kind: input, shape index: {}]
  %s1 = inlined_call_operand.hbm [shape: bf16[128,128], index: 1, kind: input, shape index: {}]
  %s2 = inlined_call_operand.vmem [shape: bf16[1,128], index: 2, kind: input, shape index: {}]
  %s3 = inlined_call_operand.hbm [shape: bf16[32,128], index: 3, kind: output, shape index: {}]
  %s4 = sld [smem:[#allocation0]]
  $region53: #{tpu_custom_call.1} parent=0
    _
  %s6 = ssub.s32 1, %s4
  %s7 = scalar_select 0, %s6, %s4
  $region1: #{tpu_custom_call.1} parent=0
    #allocation2 [shape = 'u8[8192]{0}', space=vmem, size = 0x2000, scoped, tag = 'input window, operand 0']
    #allocation3 [shape = 's32[2]{0}', space=sflag, size = 0x8, scoped, tag = 'scoped memory for tpu_custom_call.1']
    #allocation4 [shape = 's32[2]{0}', space=sflag, size = 0x8, scoped, tag = 'scoped memory for tpu_custom_call.1']
    #allocation5 [shape = 'u8[32768]{0}', space=vmem, size = 0x8000, scoped, tag = 'input window, operand 1, single buffered']
    #allocation6 [shape = 's32[1]{0}', space=sflag, size = 0x4, scoped, tag = 'scoped memory for tpu_custom_call.1']
    #allocation7 [shape = 'u8[8192]{0}', space=vmem, size = 0x2000, scoped, tag = 'output window, operand 0']
    %8 = vsyncpa [#allocation3], 0
    %s9 = scalar_lea.sflag [#allocation3], 1
    %10 = vsyncpa %s9, 0
    %11 = vsyncpa [#allocation6], 0
    %12 = vsyncpa [#allocation4], 0
    %s13 = scalar_lea.sflag [#allocation4], 1
    %14 = vsyncpa %s13, 0
    loop: start=0, step=1, limit=4
    $region2: #{tpu_custom_call.1} parent=1 // loop_pre_header
      _
    $region3: #{tpu_custom_call.1} parent=1 // loop_header
      %s16 = sphi 0, %s20
      %p17 = scmp.ge.s32.totalorder %s16, 4
      %s26 = sphi 0, %s28
      %s29 = sphi 0, %s26
      %s30 = sphi 0, %s29
      %s46 = sphi 0, %s30
      %s50 = sphi 0, %s50
      %s52 = sphi 0, %s50
      %s53 = sphi 0, %s52
      %s67 = sphi 0, %s53
      %s71 = sphi 0, %s71
      %s73 = sphi 0, %s71
      %s74 = sphi 0, %s73
      %s88 = sphi 0, %s74
      %s94 = sphi 0, %s96
      %s97 = sphi 0, %s94
      %s98 = sphi 0, %s97
      %s114 = sphi 0, %s98
    $region4: #{tpu_custom_call.1} parent=1 // loop_header_branch
      %19 = sbr.rel (%p17) target = $region8
    $region5: #{tpu_custom_call.1} parent=1 // loop_body
      %s21 = ssub.s32 %s16, 1
      %s22 = ssub.s32 %s16, 2
      %s23 = sadd.s32 %s16, 1
      %s24 = ssub.s32 %s16, %s23
      %p25 = scmp.eq.s32.totalorder %s24, 0
      %s27 = sadd.s32 %s26, 1
      %s28 = scalar_select %p25, %s26, %s27
      %p31 = pneg %p25
      %p32 = scmp.eq.s32.totalorder %s16, 1
      %p33 = por %p31, %p32
      %p34 = scmp.ne.s32.totalorder %s26, %s29
      %p35 = scmp.eq.s32.totalorder %s16, 0
      %p36 = por %p34, %p35
      %p37 = scmp.ne.s32.totalorder %s26, %s29
      %p38 = scmp.eq.s32.totalorder %s21, 1
      %p39 = por %p37, %p38
      %p40 = scmp.ne.s32.totalorder %s29, %s30
      %p41 = scmp.eq.s32.totalorder %s21, 0
      %p42 = por %p40, %p41
      %p43 = scmp.ne.s32.totalorder %s29, %s30
      %p44 = scmp.eq.s32.totalorder %s22, 1
      %p45 = por %p43, %p44
      %p47 = scmp.ne.s32.totalorder %s30, %s46
      %p48 = scmp.eq.s32.totalorder %s22, 0
      %p49 = por %p47, %p48
      %s51 = sadd.s32 %s50, 1
      %p54 = scmp.eq.s32.totalorder %s16, 1
      %p55 = scmp.ne.s32.totalorder %s50, %s52
      %p56 = scmp.eq.s32.totalorder %s16, 0
      %p57 = por %p55, %p56
      %p58 = scmp.ne.s32.totalorder %s50, %s52
      %p59 = scmp.eq.s32.totalorder %s21, 1
      %p60 = por %p58, %p59
      %p61 = scmp.ne.s32.totalorder %s52, %s53
      %p62 = scmp.eq.s32.totalorder %s21, 0
      %p63 = por %p61, %p62
      %p64 = scmp.ne.s32.totalorder %s52, %s53
      %p65 = scmp.eq.s32.totalorder %s22, 1
      %p66 = por %p64, %p65
      %p68 = scmp.ne.s32.totalorder %s53, %s67
      %p69 = scmp.eq.s32.totalorder %s22, 0
      %p70 = por %p68, %p69
      %s72 = sadd.s32 %s71, 1
      %p75 = scmp.eq.s32.totalorder %s16, 1
      %p76 = scmp.ne.s32.totalorder %s71, %s73
      %p77 = scmp.eq.s32.totalorder %s16, 0
      %p78 = por %p76, %p77
      %p79 = scmp.ne.s32.totalorder %s71, %s73
      %p80 = scmp.eq.s32.totalorder %s21, 1
      %p81 = por %p79, %p80
      %p82 = scmp.ne.s32.totalorder %s73, %s74
      %p83 = scmp.eq.s32.totalorder %s21, 0
      %p84 = por %p82, %p83
      %p85 = scmp.ne.s32.totalorder %s73, %s74
      %p86 = scmp.eq.s32.totalorder %s22, 1
      %p87 = por %p85, %p86
      %p89 = scmp.ne.s32.totalorder %s74, %s88
      %p90 = scmp.eq.s32.totalorder %s22, 0
      %p91 = por %p89, %p90
      %s92 = ssub.s32 %s16, %s23
      %p93 = scmp.eq.s32.totalorder %s92, 0
      %s95 = sadd.s32 %s94, 1
      %s96 = scalar_select %p93, %s94, %s95
      %p99 = pneg %p93
      %p100 = scmp.eq.s32.totalorder %s16, 1
      %p101 = por %p99, %p100
      %p102 = scmp.ne.s32.totalorder %s94, %s97
      %p103 = scmp.eq.s32.totalorder %s16, 0
      %p104 = por %p102, %p103
      %p105 = scmp.ne.s32.totalorder %s94, %s97
      %p106 = scmp.eq.s32.totalorder %s21, 1
      %p107 = por %p105, %p106
      %p108 = scmp.ne.s32.totalorder %s97, %s98
      %p109 = scmp.eq.s32.totalorder %s21, 0
      %p110 = por %p108, %p109
      %p111 = scmp.ne.s32.totalorder %s97, %s98
      %p112 = scmp.eq.s32.totalorder %s22, 1
      %p113 = por %p111, %p112
      %p115 = scmp.ne.s32.totalorder %s98, %s114
      %p116 = scmp.eq.s32.totalorder %s22, 0
      %p117 = por %p115, %p116
      %p118 = scmp.le.s32.totalorder 1, %s16
      %p119 = scmp.lt.s32.totalorder %s16, 3
      %p120 = pnand %p118, %p119
      %p121 = pneg %p120
      // Predicated region
      $region9: #{tpu_custom_call.1} parent=5 // pred_check
        _
      $region10: #{tpu_custom_call.1} parent=5 // pred_check_branch
        %123 = sbr.rel (%p120) target = $region12
      $region11: #{tpu_custom_call.1} parent=5 // pred_region
        %s124 = ssub.s32 %s16, 1
        // Predicated region
        $region13: #{tpu_custom_call.1} parent=11 // pred_check
          %p125 = pneg %p63
        $region14: #{tpu_custom_call.1} parent=11 // pred_check_branch
          %127 = sbr.rel (%p125) target = $region16
        $region15: #{tpu_custom_call.1} parent=11 // pred_region
          %129 = vsyncadd [#allocation6], 0
          %s130 = sshll.u32 %s1, 4
          %s131 = int_to_ptr.hbm [resolvable:$true] %s130
          %s132 = sshll.u32 [#allocation5], 4
          %s133 = int_to_ptr.vmem [resolvable:$true] %s132
          %138 = dma.hbm_to_vmem [thread:$0]  %s131, 1024, %s133, [#allocation6], 64, 64, 4
        $region16: #{tpu_custom_call.1} parent=11 // pred_fallthru
          _
        // Predicated region
        $region17: #{tpu_custom_call.1} parent=11 // pred_check
          %p139 = pneg %p84
        $region18: #{tpu_custom_call.1} parent=11 // pred_check_branch
          %141 = sbr.rel (%p139) target = $region20
        $region19: #{tpu_custom_call.1} parent=11 // pred_region
          _
        $region20: #{tpu_custom_call.1} parent=11 // pred_fallthru
          _
      $region12: #{tpu_custom_call.1} parent=5 // pred_fallthru
        _
      %p142 = scmp.lt.s32.totalorder %s16, 2
      // Predicated region
      $region21: #{tpu_custom_call.1} parent=5 // pred_check
        %p143 = pneg %p142
      $region22: #{tpu_custom_call.1} parent=5 // pred_check_branch
        %145 = sbr.rel (%p143) target = $region24
      $region23: #{tpu_custom_call.1} parent=5 // pred_region
        // Predicated region
        $region25: #{tpu_custom_call.1} parent=23 // pred_check
          %p146 = pneg %p36
        $region26: #{tpu_custom_call.1} parent=23 // pred_check_branch
          %148 = sbr.rel (%p146) target = $region28
        $region27: #{tpu_custom_call.1} parent=23 // pred_region
          %s149 = sand.u32 %s26, 1
          %s150 = scalar_lea.sflag [#allocation3], %s149
          %s151 = sand.u32 %s26, 1
          %s152 = smul.addr %s151, 8
          %s153 = scalar_lea.vmem [#allocation2], %s152
          %s154 = smul.u32 2, %s16
          %156 = vsyncadd %s150, 0
          %s157 = smul.addr %s154, 4
          %s158 = scalar_lea.hbm %s0, %s157
          %s159 = sshll.u32 %s158, 4
          %s160 = int_to_ptr.hbm [resolvable:$true] %s159
          %s161 = sshll.u32 %s153, 4
          %s162 = int_to_ptr.vmem [resolvable:$true] %s161
          %167 = dma.hbm_to_vmem [thread:$0]  %s160, 128, %s162, %s150, 64, 64, 4
        $region28: #{tpu_custom_call.1} parent=23 // pred_fallthru
          _
      $region24: #{tpu_custom_call.1} parent=5 // pred_fallthru
        _
      %p168 = scmp.le.s32.totalorder 1, %s16
      %p169 = scmp.lt.s32.totalorder %s16, 3
      %p170 = pnand %p168, %p169
      %p171 = pneg %p170
      // Predicated region
      $region29: #{tpu_custom_call.1} parent=5 // pred_check
        _
      $region30: #{tpu_custom_call.1} parent=5 // pred_check_branch
        %173 = sbr.rel (%p170) target = $region32
      $region31: #{tpu_custom_call.1} parent=5 // pred_region
        %s174 = ssub.s32 %s16, 1
        %s175 = sand.u32 %s29, 1
        %s176 = scalar_lea.sflag [#allocation3], %s175
        %s177 = sand.u32 %s29, 1
        %s178 = smul.addr %s177, 8
        %s179 = scalar_lea.vmem [#allocation2], %s178
        // Predicated region
        $region33: #{tpu_custom_call.1} parent=31 // pred_check
          %p180 = pneg %p42
        $region34: #{tpu_custom_call.1} parent=31 // pred_check_branch
          %182 = sbr.rel (%p180) target = $region36
        $region35: #{tpu_custom_call.1} parent=31 // pred_region
          %184 = dma.done %s176, 128
        $region36: #{tpu_custom_call.1} parent=31 // pred_fallthru
          _
        // Predicated region
        $region37: #{tpu_custom_call.1} parent=31 // pred_check
          %p185 = pneg %p63
        $region38: #{tpu_custom_call.1} parent=31 // pred_check_branch
          %187 = sbr.rel (%p185) target = $region40
        $region39: #{tpu_custom_call.1} parent=31 // pred_region
          %189 = dma.done [#allocation6], 1024
        $region40: #{tpu_custom_call.1} parent=31 // pred_fallthru
          _
        %s190 = sand.u32 %s29, 1
        %s191 = scalar_lea.sflag [#allocation3], %s190
        %s192 = sand.u32 %s29, 1
        %s193 = smul.addr %s192, 8
        %s194 = scalar_lea.vmem [#allocation2], %s193
        %p195 = pneg %p42
        %p196 = pneg %p39
        %p197 = pneg %p63
        %p198 = pneg %p60
        %p199 = pneg %p84
        %p200 = pneg %p81
        %p201 = pneg %p110
        %p202 = pneg %p107
        %s203 = sand.u32 %s97, 1
        %s204 = scalar_lea.sflag [#allocation4], %s203
        %s205 = sand.u32 %s97, 1
        %s206 = smul.addr %s205, 8
        %s207 = scalar_lea.vmem [#allocation7], %s206
        %s208 = smul.u32 2, %s21
        %s209 = smul.u32 2, %s21
        %v210 = vld [vmem:[%s179] sm:$0xf]
        %v211 = vld [vmem:[%s179 + $0x4] sm:$0xf]
        %v212 = vld [vmem:[#allocation5] sm:$0xf]
        %v213 = vld [vmem:[#allocation5 + $0x4] sm:$0xf]
        %v214 = vld [vmem:[#allocation5 + $0x8] sm:$0xf]
        %v215 = vld [vmem:[#allocation5 + $0xc] sm:$0xf]
        %v216 = vld [vmem:[#allocation5 + $0x10] sm:$0xf]
        %v217 = vld [vmem:[#allocation5 + $0x14] sm:$0xf]
        %v218 = vld [vmem:[#allocation5 + $0x18] sm:$0xf]
        %v219 = vld [vmem:[#allocation5 + $0x1c] sm:$0xf]
        %v220 = vld [vmem:[#allocation5 + $0x20] sm:$0xf]
        %v221 = vld [vmem:[#allocation5 + $0x24] sm:$0xf]
        %v222 = vld [vmem:[#allocation5 + $0x28] sm:$0xf]
        %v223 = vld [vmem:[#allocation5 + $0x2c] sm:$0xf]
        %v224 = vld [vmem:[#allocation5 + $0x30] sm:$0xf]
        %v225 = vld [vmem:[#allocation5 + $0x34] sm:$0xf]
        %v226 = vld [vmem:[#allocation5 + $0x38] sm:$0xf]
        %v227 = vld [vmem:[#allocation5 + $0x3c] sm:$0xf]
        %v228 = vld [vmem:[%s2] sm:$0x1]
        %v229 = vunpack.c.l.bf16 %v228
        %v230 = vperm.slane %v229, 0
        %v233 = vunpack.c.l.b16 %v210
        %v234 = vunpack.c.l.b16 %v211
        %v235 = vpack.c.b16 %v234, %v233
        %v253 = vunpack.c.l.b16 %v212
        %v254 = vunpack.c.l.b16 %v213
        %v255 = vunpack.c.l.b16 %v214
        %v256 = vunpack.c.l.b16 %v215
        %v257 = vunpack.c.l.b16 %v216
        %v258 = vunpack.c.l.b16 %v217
        %v259 = vunpack.c.l.b16 %v218
        %v260 = vunpack.c.l.b16 %v219
        %v261 = vunpack.c.l.b16 %v220
        %v262 = vunpack.c.l.b16 %v221
        %v263 = vunpack.c.l.b16 %v222
        %v264 = vunpack.c.l.b16 %v223
        %v265 = vunpack.c.l.b16 %v224
        %v266 = vunpack.c.l.b16 %v225
        %v267 = vunpack.c.l.b16 %v226
        %v268 = vunpack.c.l.b16 %v227
        %v269 = vpack.c.b16 %v254, %v253
        %v270 = vpack.c.b16 %v256, %v255
        %v271 = vpack.c.b16 %v258, %v257
        %v272 = vpack.c.b16 %v260, %v259
        %v273 = vpack.c.b16 %v262, %v261
        %v274 = vpack.c.b16 %v264, %v263
        %v275 = vpack.c.b16 %v266, %v265
        %v276 = vpack.c.b16 %v268, %v267
        %285 = vmatpush.bf16.msra.mxu0 %v276
        %286 = vmatpush.bf16.msra.mxu0 %v275
        %287 = vmatpush.bf16.msra.mxu0 %v274
        %288 = vmatpush.bf16.msra.mxu0 %v273
        %289 = vmatpush.bf16.msra.mxu0 %v272
        %290 = vmatpush.bf16.msra.mxu0 %v271
        %291 = vmatpush.bf16.msra.mxu0 %v270
        %292 = vmatpush.bf16.msra.mxu0 %v269
        %293 = vmatmul.bf16.gmra.mxu0 %v235
        %v294 = vpop.f32.mrf.mxu0
        %v295 = vadd.f32 %v230, %v294
        %v296 = vpop.f32.mrf.mxu0
        %v297 = vadd.f32 %v230, %v296
        %298 = vdwg.mxu0
        %v299 = vpack.c.bf16 %v295, %v295
        %v300 = vpack.c.bf16 %v297, %v297
        %301 = vst [vmem:[%s207] sm:$0xf] %v299
        %302 = vst [vmem:[%s207 + $0x4] sm:$0xf] %v300
        %s303 = sand.u32 %s97, 1
        %s304 = scalar_lea.sflag [#allocation4], %s303
        %s305 = sand.u32 %s97, 1
        %s306 = smul.addr %s305, 8
        %s307 = scalar_lea.vmem [#allocation7], %s306
        // Predicated region
        $region41: #{tpu_custom_call.1} parent=31 // pred_check
          %p308 = pneg %p107
        $region42: #{tpu_custom_call.1} parent=31 // pred_check_branch
          %310 = sbr.rel (%p308) target = $region44
        $region43: #{tpu_custom_call.1} parent=31 // pred_region
          %s311 = smul.u32 2, %s21
          %313 = vsyncadd %s304, 0
          %s314 = smul.addr %s311, 4
          %s315 = scalar_lea.hbm %s3, %s314
          %s316 = sshll.u32 %s307, 4
          %s317 = int_to_ptr.vmem [resolvable:$true] %s316
          %s318 = sshll.u32 %s315, 4
          %s319 = int_to_ptr.hbm [resolvable:$true] %s318
          %324 = dma.vmem_to_hbm [thread:$0]  %s317, 128, %s319, %s304, 64, 64, 4
        $region44: #{tpu_custom_call.1} parent=31 // pred_fallthru
          _
      $region32: #{tpu_custom_call.1} parent=5 // pred_fallthru
        _
      %p325 = scmp.le.s32.totalorder 2, %s16
      // Predicated region
      $region45: #{tpu_custom_call.1} parent=5 // pred_check
        %p326 = pneg %p325
      $region46: #{tpu_custom_call.1} parent=5 // pred_check_branch
        %328 = sbr.rel (%p326) target = $region48
      $region47: #{tpu_custom_call.1} parent=5 // pred_region
        %s329 = ssub.s32 %s16, 2
        // Predicated region
        $region49: #{tpu_custom_call.1} parent=47 // pred_check
          %p330 = pneg %p113
        $region50: #{tpu_custom_call.1} parent=47 // pred_check_branch
          %332 = sbr.rel (%p330) target = $region52
        $region51: #{tpu_custom_call.1} parent=47 // pred_region
          %s333 = sand.u32 %s98, 1
          %s334 = scalar_lea.sflag [#allocation4], %s333
          %s335 = sand.u32 %s98, 1
          %s336 = smul.addr %s335, 8
          %s337 = scalar_lea.vmem [#allocation7], %s336
          %339 = dma.done %s334, 128
        $region52: #{tpu_custom_call.1} parent=47 // pred_fallthru
          _
      $region48: #{tpu_custom_call.1} parent=5 // pred_fallthru
        _
    $region6: #{tpu_custom_call.1} parent=1 // loop_footer
      %s20 = sadd.s32 1, %s16
    $region7: #{tpu_custom_call.1} parent=1 // loop_footer_branch
      %15 = sbr.rel target = $region3
    $region8: #{tpu_custom_call.1} parent=1 // loop_exit
      _
    %340 = vsyncpa [#allocation3], 1
    %s341 = scalar_lea.sflag [#allocation3], 1
    %342 = vsyncpa %s341, 1
    %343 = vsyncpa [#allocation6], 1
    %344 = vsyncpa [#allocation4], 1
    %s345 = scalar_lea.sflag [#allocation4], 1
    %346 = vsyncpa %s345, 1

</llo_original>
